<compile_context>
chip_gen: v6e
topology: v6e:2x2x1
jax: 0.10.0
libtpu: 0.0.40
codegen_flags: <defaults>
</compile_context>

<pallas_src>
import functools

import jax
import jax.numpy as jnp
import numpy as np
from jax.experimental import pallas as pl
from jax.experimental.pallas import tpu as pltpu


def _round_up(x, m):
    return ((x + m - 1) // m) * m


def _mtm_kernel(emb_ref, w_ref, b_ref, label_ref, weight_ref,
                logits_ref, stats_ref, *,
                groups, group_range, max_group_index,
                batch_size, block_rows, needs_mask):
    two_g = 2 * groups

    # Fused classifier|regressor matmul: one MXU pass over the emb tile.
    emb = emb_ref[...]                                    # (TB, D)  f32 or bf16
    w = w_ref[...]                                        # (D, 2G)  same dtype
    fused = jnp.dot(emb, w, preferred_element_type=jnp.float32) + b_ref[...]  # (TB, 2G) f32

    label = label_ref[...]                                # (TB, 1) f32
    weight = weight_ref[...]                              # (TB, 1) f32

    # group_gt = clamp(trunc(label / group_range), 0, groups-1)  (labels >= 0)
    group_gt = jnp.clip((label / jnp.float32(group_range)).astype(jnp.int32),
                        0, max_group_index)               # (TB, 1) int32

    # Columns [0:G) of `fused` are classifier logits, [G:2G) regressor preds.
    # Select via iota masks (no lane slicing needed).
    col = jax.lax.broadcasted_iota(jnp.int32, (block_rows, two_g), 1)
    cls_mask = col < groups                               # (TB, 2G) bool
    onehot_cls = (col == group_gt).astype(jnp.float32)    # group_gt < G always
    onehot_reg = (col == group_gt + groups).astype(jnp.float32)

    # torch.gather(reg_pred, index=group_gt, dim=1)
    logits = jnp.sum(fused * onehot_reg, axis=-1, keepdims=True)  # (TB, 1)
    logits_ref[...] = logits

    # Valid-row mask for the padded tail of the last tile.
    if needs_mask:
        row = (jax.lax.broadcasted_iota(jnp.int32, (block_rows, 1), 0)
               + pl.program_id(0) * block_rows)
        valid = (row < batch_size).astype(jnp.float32)    # (TB, 1)
    else:
        valid = jnp.float32(1.0)

    # Cross-entropy over the classifier half (masked log-softmax).
    neg = jnp.float32(-1e30)
    m = jnp.max(jnp.where(cls_mask, fused, neg), axis=-1, keepdims=True)
    ez = jnp.where(cls_mask, jnp.exp(fused - m), 0.0)
    lse = jnp.log(jnp.sum(ez, axis=-1, keepdims=True))
    ce_rows = -jnp.sum((fused - m - lse) * onehot_cls, axis=-1, keepdims=True)
    ce_sum = jnp.sum(ce_rows * valid)

    # weighted_mse partial sum: sum((logits - label/5)^2 * weight)
    diff = logits - label / jnp.float32(5.0)
    mse_sum = jnp.sum(diff * diff * weight * valid)

    # Lane-padded stats slab: lane 0 = CE partial, lane 1 = MSE partial.
    lane = jax.lax.broadcasted_iota(jnp.int32, (1, 1, 128), 2)
    stats_ref[...] = (jnp.where(lane == 0, ce_sum, 0.0)
                      + jnp.where(lane == 1, mse_sum, 0.0)).astype(jnp.float32)


def multitask_forward(pair_emb, wc, bc, wr, br, label, weight, *,
                      group_range, max_group_index, sigma,
                      block_rows=512, compute_dtype=jnp.float32):
    B, D = pair_emb.shape
    G = wc.shape[1]

    tb = _round_up(min(int(block_rows), _round_up(B, 8)), 8)
    bp = _round_up(B, tb)
    num_tiles = bp // tb

    if bp != B:
        pad = bp - B
        pair_emb = jnp.pad(pair_emb, ((0, pad), (0, 0)))
        label = jnp.pad(label, ((0, pad), (0, 0)))
        weight = jnp.pad(weight, ((0, pad), (0, 0)))

    emb_in = pair_emb.astype(compute_dtype)
    w_cat = jnp.concatenate([wc, wr], axis=1).astype(compute_dtype)   # (D, 2G)
    b_cat = jnp.concatenate([bc, br], axis=1).astype(jnp.float32)     # (1, 2G)
    label = label.astype(jnp.float32)
    weight = weight.astype(jnp.float32)

    kernel = functools.partial(
        _mtm_kernel,
        groups=int(G),
        group_range=float(group_range),
        max_group_index=int(max_group_index),
        batch_size=int(B),
        block_rows=int(tb),
        needs_mask=bool(bp != B),
    )

    # VMEM budget: double-buffered emb tiles + resident weights, safe on
    # v5e (16 MiB scoped default), v6e (128 MiB phys) and v7x (64 MiB phys).
    tile_bytes = tb * D * jnp.dtype(compute_dtype).itemsize
    vmem_limit = int(min(48 * 1024 * 1024,
                         max(32 * 1024 * 1024, 6 * tile_bytes)))

    logits_p, stats = pl.pallas_call(
        kernel,
        grid=(num_tiles,),
        in_specs=[
            pl.BlockSpec((tb, D), lambda i: (i, 0)),      # emb tile (pipelined)
            pl.BlockSpec((D, 2 * G), lambda i: (0, 0)),   # fused weight (resident)
            pl.BlockSpec((1, 2 * G), lambda i: (0, 0)),   # fused bias   (resident)
            pl.BlockSpec((tb, 1), lambda i: (i, 0)),      # label tile
            pl.BlockSpec((tb, 1), lambda i: (i, 0)),      # weight tile
        ],
        out_specs=[
            pl.BlockSpec((tb, 1), lambda i: (i, 0)),          # logits
            pl.BlockSpec((1, 1, 128), lambda i: (i, 0, 0)),   # per-tile CE/MSE partials
        ],
        out_shape=[
            jax.ShapeDtypeStruct((bp, 1), jnp.float32),
            jax.ShapeDtypeStruct((num_tiles, 1, 128), jnp.float32),
        ],
        compiler_params=pltpu.CompilerParams(
            dimension_semantics=("parallel",),
            vmem_limit_bytes=vmem_limit,
        ),
    )(emb_in, w_cat, b_cat, label, weight)

    stats = stats.reshape(num_tiles, 128)
    ce = jnp.sum(stats[:, 0]) / jnp.float32(B)
    mse = jnp.sum(stats[:, 1]) / jnp.float32(B)
    loss = jnp.float32(sigma) * mse + ce
    return {"logits": logits_p[:B], "ce": ce, "mse_loss": mse, "loss": loss}


def _reference(pair_emb, wc, bc, wr, br, label, weight, *,
               group_range, max_group_index, sigma):
    group_logits = pair_emb @ wc + bc
    reg_pred = pair_emb @ wr + br
    group_gt = jnp.clip((label / group_range).astype(jnp.int32), 0, max_group_index)
    logits = jnp.take_along_axis(reg_pred, group_gt, axis=1)
    logp = jax.nn.log_softmax(group_logits, axis=-1)
    ce = -jnp.mean(jnp.take_along_axis(logp, group_gt, axis=1))
    mse = jnp.mean((logits - label / 5.0) ** 2 * weight)
    return logits, ce, mse, sigma * mse + ce


def _make_inputs(key, B, D, G):
    ks = jax.random.split(key, 7)
    pair_emb = jax.random.normal(ks[0], (B, D), dtype=jnp.float32)
    wc = 0.05 * jax.random.normal(ks[1], (D, G), dtype=jnp.float32)
    bc = 0.05 * jax.random.normal(ks[2], (1, G), dtype=jnp.float32)
    wr = 0.05 * jax.random.normal(ks[3], (D, G), dtype=jnp.float32)
    br = 0.05 * jax.random.normal(ks[4], (1, G), dtype=jnp.float32)
    label = jax.random.uniform(ks[5], (B, 1), dtype=jnp.float32, minval=0.0, maxval=5.0)
    weight = jax.random.uniform(ks[6], (B, 1), dtype=jnp.float32, minval=0.5, maxval=1.5)
    return pair_emb, wc, bc, wr, br, label, weight


def _check(out, ref, rtol, atol):
    ref_logits, ref_ce, ref_mse, ref_total = ref
    np.testing.assert_allclose(np.asarray(out["logits"]), np.asarray(ref_logits),
                               rtol=rtol, atol=atol)
    np.testing.assert_allclose(float(out["ce"]), float(ref_ce), rtol=rtol, atol=atol)
    np.testing.assert_allclose(float(out["mse_loss"]), float(ref_mse), rtol=rtol, atol=atol)
    np.testing.assert_allclose(float(out["loss"]), float(ref_total), rtol=rtol, atol=atol)


if __name__ == "__main__":
    key = jax.random.PRNGKey(0)

    # Case 1: small shapes (single tile), f32 matmul, tight check.
    B, D, G = 8, 32, 8
    group_range, max_group_index, sigma = 1.0, G - 1, 1.0
    inputs = _make_inputs(key, B, D, G)
    out = multitask_forward(*inputs, group_range=group_range,
                            max_group_index=max_group_index, sigma=sigma,
                            block_rows=256, compute_dtype=jnp.float32)
    jax.block_until_ready(out)
    ref = _reference(*inputs, group_range=group_range,
                     max_group_index=max_group_index, sigma=sigma)
    _check(out, ref, rtol=1e-5, atol=1e-5)

    # Case 2: multi-tile grid with padded tail (B % TB != 0), f32.
    B2, D2, G2 = 300, 256, 8
    inputs2 = _make_inputs(jax.random.PRNGKey(1), B2, D2, G2)
    out2 = multitask_forward(*inputs2, group_range=group_range,
                             max_group_index=G2 - 1, sigma=sigma,
                             block_rows=128, compute_dtype=jnp.float32)
    jax.block_until_ready(out2)
    ref2 = _reference(*inputs2, group_range=group_range,
                      max_group_index=G2 - 1, sigma=sigma)
    _check(out2, ref2, rtol=1e-4, atol=1e-4)

    # Case 3: bf16 matmul inputs (f32 accumulation), loose check.
    out3 = multitask_forward(*inputs, group_range=group_range,
                             max_group_index=max_group_index, sigma=sigma,
                             block_rows=256, compute_dtype=jnp.bfloat16)
    jax.block_until_ready(out3)
    _check(out3, ref, rtol=0.1, atol=0.1)

    print("KERNEL_OK")
</pallas_src>

<mosaic_0001>
module attributes {stable_mosaic.version = 11 : i64} {
  func.func @_mtm_kernel(%arg0: i32, %arg1: memref<8x32xf32, #tpu.memory_space<vmem>>, %arg2: memref<32x16xf32, #tpu.memory_space<vmem>>, %arg3: memref<1x16xf32, #tpu.memory_space<vmem>>, %arg4: memref<8x1xf32, #tpu.memory_space<vmem>>, %arg5: memref<8x1xf32, #tpu.memory_space<vmem>>, %arg6: memref<8x1xf32, #tpu.memory_space<vmem>>, %arg7: memref<1x1x128xf32, #tpu.memory_space<vmem>>) attributes {dimension_semantics = [#tpu.dimension_semantics<parallel>], iteration_bounds = array<i64: 1>, scalar_prefetch = 0 : i64, scratch_operands = 0 : i64, tpu.core_type = #tpu.core_type<tc>, window_params = [{transform_indices = @transform_0, window_bounds = array<i64: 8, 32>}, {pipeline_mode = #tpu.pipeline_mode<synchronous>, transform_indices = @transform_1, window_bounds = array<i64: 32, 16>}, {pipeline_mode = #tpu.pipeline_mode<synchronous>, transform_indices = @transform_2, window_bounds = array<i64: 1, 16>}, {transform_indices = @transform_3, window_bounds = array<i64: 8, 1>}, {transform_indices = @transform_4, window_bounds = array<i64: 8, 1>}, {transform_indices = @transform_5, window_bounds = array<i64: 8, 1>}, {transform_indices = @transform_6, window_bounds = array<i64: 1, 1, 128>}]} {
    %c0 = arith.constant 0 : index
    %c0_0 = arith.constant 0 : index
    %0 = vector.load %arg1[%c0, %c0_0] : memref<8x32xf32, #tpu.memory_space<vmem>>, vector<8x32xf32>
    %c0_1 = arith.constant 0 : index
    %c0_2 = arith.constant 0 : index
    %1 = vector.load %arg2[%c0_1, %c0_2] : memref<32x16xf32, #tpu.memory_space<vmem>>, vector<32x16xf32>
    %cst = arith.constant dense<0.000000e+00> : vector<8x16xf32>
    %2 = tpu.matmul %0, %1, %cst {dimension_numbers = #tpu.dot_dimension_numbers<[1], [0], [0], [1], [0, 0, 1, 1], [], []>} : vector<8x32xf32>, vector<32x16xf32>, vector<8x16xf32> -> vector<8x16xf32>
    %c0_3 = arith.constant 0 : index
    %c0_4 = arith.constant 0 : index
    %3 = vector.load %arg3[%c0_3, %c0_4] : memref<1x16xf32, #tpu.memory_space<vmem>>, vector<1x16xf32>
    %4 = vector.broadcast %3 : vector<1x16xf32> to vector<8x16xf32>
    %5 = arith.addf %2, %4 : vector<8x16xf32>
    %c0_5 = arith.constant 0 : index
    %c0_6 = arith.constant 0 : index
    %6 = vector.load %arg4[%c0_5, %c0_6] : memref<8x1xf32, #tpu.memory_space<vmem>>, vector<8x1xf32>
    %c0_7 = arith.constant 0 : index
    %c0_8 = arith.constant 0 : index
    %7 = vector.load %arg5[%c0_7, %c0_8] : memref<8x1xf32, #tpu.memory_space<vmem>>, vector<8x1xf32>
    %cst_9 = arith.constant 1.000000e+00 : f32
    %8 = vector.broadcast %cst_9 : f32 to vector<8x1xf32>
    %9 = arith.divf %6, %8 : vector<8x1xf32>
    %10 = arith.fptosi %9 : vector<8x1xf32> to vector<8x1xi32>
    %c0_i32 = arith.constant 0 : i32
    %c7_i32 = arith.constant 7 : i32
    %11 = vector.broadcast %c0_i32 : i32 to vector<8x1xi32>
    %12 = arith.maxsi %11, %10 : vector<8x1xi32>
    %13 = vector.broadcast %c7_i32 : i32 to vector<8x1xi32>
    %14 = arith.minsi %13, %12 : vector<8x1xi32>
    %15 = tpu.iota {dimensions = array<i32: 1>} : vector<8x16xi32>
    %c8_i32 = arith.constant 8 : i32
    %16 = vector.broadcast %c8_i32 : i32 to vector<8x16xi32>
    %17 = arith.cmpi slt, %15, %16 : vector<8x16xi32>
    %18 = vector.broadcast %14 : vector<8x1xi32> to vector<8x16xi32>
    %19 = arith.cmpi eq, %15, %18 : vector<8x16xi32>
    %20 = arith.extui %19 : vector<8x16xi1> to vector<8x16xi32>
    %21 = arith.sitofp %20 : vector<8x16xi32> to vector<8x16xf32>
    %c8_i32_10 = arith.constant 8 : i32
    %22 = vector.broadcast %c8_i32_10 : i32 to vector<8x1xi32>
    %23 = arith.addi %14, %22 : vector<8x1xi32>
    %24 = vector.broadcast %23 : vector<8x1xi32> to vector<8x16xi32>
    %25 = arith.cmpi eq, %15, %24 : vector<8x16xi32>
    %26 = arith.extui %25 : vector<8x16xi1> to vector<8x16xi32>
    %27 = arith.sitofp %26 : vector<8x16xi32> to vector<8x16xf32>
    %28 = arith.mulf %5, %27 : vector<8x16xf32>
    %cst_11 = arith.constant dense<0.000000e+00> : vector<8xf32>
    %29 = vector.multi_reduction <add>, %28, %cst_11 [1] : vector<8x16xf32> to vector<8xf32>
    %30 = vector.shape_cast %29 : vector<8xf32> to vector<8x1xf32>
    %c0_12 = arith.constant 0 : index
    %c0_13 = arith.constant 0 : index
    %31 = vector.load %arg6[%c0_12, %c0_13] : memref<8x1xf32, #tpu.memory_space<vmem>>, vector<8x1xf32>
    tpu.vector_store %arg6[%c0_12, %c0_13], %30 {strides = array<i32>} : memref<8x1xf32, #tpu.memory_space<vmem>>, vector<8x1xf32>,
    %cst_14 = arith.constant -1.000000e+30 : f32
    %32 = vector.broadcast %cst_14 : f32 to vector<8x16xf32>
    %33 = arith.select %17, %5, %32 : vector<8x16xi1>, vector<8x16xf32>
    %cst_15 = arith.constant dense<0xFF800000> : vector<8xf32>
    %34 = vector.multi_reduction <maximumf>, %33, %cst_15 [1] : vector<8x16xf32> to vector<8xf32>
    %35 = vector.shape_cast %34 : vector<8xf32> to vector<8x1xf32>
    %36 = vector.broadcast %35 : vector<8x1xf32> to vector<8x16xf32>
    %37 = arith.subf %5, %36 : vector<8x16xf32>
    %38 = math.exp %37 : vector<8x16xf32>
    %cst_16 = arith.constant 0.000000e+00 : f32
    %39 = vector.broadcast %cst_16 : f32 to vector<8x16xf32>
    %40 = arith.select %17, %38, %39 : vector<8x16xi1>, vector<8x16xf32>
    %cst_17 = arith.constant dense<0.000000e+00> : vector<8xf32>
    %41 = vector.multi_reduction <add>, %40, %cst_17 [1] : vector<8x16xf32> to vector<8xf32>
    %42 = vector.shape_cast %41 : vector<8xf32> to vector<8x1xf32>
    %43 = math.log %42 : vector<8x1xf32>
    %44 = vector.broadcast %35 : vector<8x1xf32> to vector<8x16xf32>
    %45 = arith.subf %5, %44 : vector<8x16xf32>
    %46 = vector.broadcast %43 : vector<8x1xf32> to vector<8x16xf32>
    %47 = arith.subf %45, %46 : vector<8x16xf32>
    %48 = arith.mulf %47, %21 : vector<8x16xf32>
    %cst_18 = arith.constant dense<0.000000e+00> : vector<8xf32>
    %49 = vector.multi_reduction <add>, %48, %cst_18 [1] : vector<8x16xf32> to vector<8xf32>
    %50 = vector.shape_cast %49 : vector<8xf32> to vector<8x1xf32>
    %cst_19 = arith.constant 0.000000e+00 : f32
    %51 = vector.broadcast %cst_19 : f32 to vector<8x1xf32>
    %52 = arith.subf %51, %50 : vector<8x1xf32>
    %cst_20 = arith.constant 1.000000e+00 : f32
    %53 = vector.broadcast %cst_20 : f32 to vector<8x1xf32>
    %54 = arith.mulf %52, %53 : vector<8x1xf32>
    %55 = vector.shape_cast %54 : vector<8x1xf32> to vector<1x8x1xf32>
    %cst_21 = arith.constant dense<0.000000e+00> : vector<1xf32>
    %56 = vector.multi_reduction <add>, %55, %cst_21 [1, 2] : vector<1x8x1xf32> to vector<1xf32>
    %57 = vector.shape_cast %56 : vector<1xf32> to vector<1x1x1xf32>
    %58 = vector.extract %57[0, 0, 0] : f32 from vector<1x1x1xf32>
    %cst_22 = arith.constant 5.000000e+00 : f32
    %59 = vector.broadcast %cst_22 : f32 to vector<8x1xf32>
    %60 = arith.divf %6, %59 : vector<8x1xf32>
    %61 = arith.subf %30, %60 : vector<8x1xf32>
    %62 = arith.mulf %61, %61 : vector<8x1xf32>
    %63 = arith.mulf %62, %7 : vector<8x1xf32>
    %cst_23 = arith.constant 1.000000e+00 : f32
    %64 = vector.broadcast %cst_23 : f32 to vector<8x1xf32>
    %65 = arith.mulf %63, %64 : vector<8x1xf32>
    %66 = vector.shape_cast %65 : vector<8x1xf32> to vector<1x8x1xf32>
    %cst_24 = arith.constant dense<0.000000e+00> : vector<1xf32>
    %67 = vector.multi_reduction <add>, %66, %cst_24 [1, 2] : vector<1x8x1xf32> to vector<1xf32>
    %68 = vector.shape_cast %67 : vector<1xf32> to vector<1x1x1xf32>
    %69 = vector.extract %68[0, 0, 0] : f32 from vector<1x1x1xf32>
    %70 = tpu.iota {dimensions = array<i32: 2>} : vector<1x1x128xi32>
    %c0_i32_25 = arith.constant 0 : i32
    %71 = vector.broadcast %c0_i32_25 : i32 to vector<1x1x128xi32>
    %72 = arith.cmpi eq, %70, %71 : vector<1x1x128xi32>
    %cst_26 = arith.constant 0.000000e+00 : f32
    %73 = vector.broadcast %58 : f32 to vector<1x1x128xf32>
    %74 = vector.broadcast %cst_26 : f32 to vector<1x1x128xf32>
    %75 = arith.select %72, %73, %74 : vector<1x1x128xi1>, vector<1x1x128xf32>
    %c1_i32 = arith.constant 1 : i32
    %76 = vector.broadcast %c1_i32 : i32 to vector<1x1x128xi32>
    %77 = arith.cmpi eq, %70, %76 : vector<1x1x128xi32>
    %cst_27 = arith.constant 0.000000e+00 : f32
    %78 = vector.broadcast %69 : f32 to vector<1x1x128xf32>
    %79 = vector.broadcast %cst_27 : f32 to vector<1x1x128xf32>
    %80 = arith.select %77, %78, %79 : vector<1x1x128xi1>, vector<1x1x128xf32>
    %81 = arith.addf %75, %80 : vector<1x1x128xf32>
    %c0_28 = arith.constant 0 : index
    %c0_29 = arith.constant 0 : index
    %c0_30 = arith.constant 0 : index
    %82 = vector.load %arg7[%c0_28, %c0_29, %c0_30] : memref<1x1x128xf32, #tpu.memory_space<vmem>>, vector<1x1x128xf32>
    tpu.vector_store %arg7[%c0_28, %c0_29, %c0_30], %81 {strides = array<i32>} : memref<1x1x128xf32, #tpu.memory_space<vmem>>, vector<1x1x128xf32>,
    return
  }
  func.func @transform_0(%arg0: i32) -> (i32, i32) {
    %c0_i32 = arith.constant 0 : i32
    %c0_i32_0 = arith.constant 0 : i32
    return %arg0, %c0_i32 : i32, i32
  }
  func.func @transform_1(%arg0: i32) -> (i32, i32) {
    %c0_i32 = arith.constant 0 : i32
    %c0_i32_0 = arith.constant 0 : i32
    %c0_i32_1 = arith.constant 0 : i32
    return %c0_i32, %c0_i32_0 : i32, i32
  }
  func.func @transform_2(%arg0: i32) -> (i32, i32) {
    %c0_i32 = arith.constant 0 : i32
    %c0_i32_0 = arith.constant 0 : i32
    %c0_i32_1 = arith.constant 0 : i32
    return %c0_i32, %c0_i32_0 : i32, i32
  }
  func.func @transform_3(%arg0: i32) -> (i32, i32) {
    %c0_i32 = arith.constant 0 : i32
    %c0_i32_0 = arith.constant 0 : i32
    return %arg0, %c0_i32 : i32, i32
  }
  func.func @transform_4(%arg0: i32) -> (i32, i32) {
    %c0_i32 = arith.constant 0 : i32
    %c0_i32_0 = arith.constant 0 : i32
    return %arg0, %c0_i32 : i32, i32
  }
  func.func @transform_5(%arg0: i32) -> (i32, i32) {
    %c0_i32 = arith.constant 0 : i32
    %c0_i32_0 = arith.constant 0 : i32
    return %arg0, %c0_i32 : i32, i32
  }
  func.func @transform_6(%arg0: i32) -> (i32, i32, i32) {
    %c0_i32 = arith.constant 0 : i32
    %c0_i32_0 = arith.constant 0 : i32
    %c0_i32_1 = arith.constant 0 : i32
    return %arg0, %c0_i32, %c0_i32_0 : i32, i32, i32
  }
}

</mosaic_0001>

<llo_original>
// kernel: tpu_custom_call.1
$region0: #{tpu_custom_call.1}
  #allocation0 [shape = 'u32[]', space=smem, size = 0x4, offset = 0x4, fixed_abs, tag = 'smem constant byte address 0x4 - core index']
  #allocation1 [shape = 'u32[144,128]{1,0:T(1,128)}', space=vmem, size = 0x12000, scoped, tag = 'internal scratch']
  %s0 = inlined_call_operand.vmem [shape: f32[8,32], index: 0, kind: input, shape index: {}]
  %s1 = inlined_call_operand.vmem [shape: f32[32,16], index: 1, kind: input, shape index: {}]
  %s2 = inlined_call_operand.vmem [shape: f32[1,16], index: 2, kind: input, shape index: {}]
  %s3 = inlined_call_operand.vmem [shape: f32[8,1], index: 3, kind: input, shape index: {}]
  %s4 = inlined_call_operand.vmem [shape: f32[8,1], index: 4, kind: input, shape index: {}]
  %s5 = inlined_call_operand.vmem [shape: f32[8,1], index: 5, kind: output, shape index: {0}]
  %s6 = inlined_call_operand.hbm [shape: f32[1,1,128], index: 6, kind: output, shape index: {1}]
  %7 = xla_tuple %s5, %s6
  %s8 = sld [smem:[#allocation0]]
  $region38: #{tpu_custom_call.1} parent=0
    _
  %s10 = ssub.s32 1, %s8
  %s11 = scalar_select 0, %s10, %s8
  $region1: #{tpu_custom_call.1} parent=0
    #allocation2 [shape = 'u8[512]{0}', space=vmem, size = 0x400, scoped, tag = 'output window, operand 1, single buffered']
    #allocation3 [shape = 's32[1]{0}', space=sflag, size = 0x4, scoped, tag = 'scoped memory for tpu_custom_call.1']
    %12 = vsyncpa [#allocation3], 0
    // Predicated region
    $region2: #{tpu_custom_call.1} parent=1 // pred_check
      _
    $region3: #{tpu_custom_call.1} parent=1 // pred_check_branch
      %14 = sbr.rel (0) target = $region5
    $region4: #{tpu_custom_call.1} parent=1 // pred_region
      _
    $region5: #{tpu_custom_call.1} parent=1 // pred_fallthru
      _
    // Predicated region
    $region6: #{tpu_custom_call.1} parent=1 // pred_check
      _
    $region7: #{tpu_custom_call.1} parent=1 // pred_check_branch
      %16 = sbr.rel (0) target = $region9
    $region8: #{tpu_custom_call.1} parent=1 // pred_region
      _
    $region9: #{tpu_custom_call.1} parent=1 // pred_fallthru
      _
    // Predicated region
    $region10: #{tpu_custom_call.1} parent=1 // pred_check
      _
    $region11: #{tpu_custom_call.1} parent=1 // pred_check_branch
      %18 = sbr.rel (0) target = $region13
    $region12: #{tpu_custom_call.1} parent=1 // pred_region
      _
    $region13: #{tpu_custom_call.1} parent=1 // pred_fallthru
      _
    // Predicated region
    $region14: #{tpu_custom_call.1} parent=1 // pred_check
      _
    $region15: #{tpu_custom_call.1} parent=1 // pred_check_branch
      %20 = sbr.rel (0) target = $region17
    $region16: #{tpu_custom_call.1} parent=1 // pred_region
      _
    $region17: #{tpu_custom_call.1} parent=1 // pred_fallthru
      _
    // Predicated region
    $region18: #{tpu_custom_call.1} parent=1 // pred_check
      _
    $region19: #{tpu_custom_call.1} parent=1 // pred_check_branch
      %22 = sbr.rel (0) target = $region21
    $region20: #{tpu_custom_call.1} parent=1 // pred_region
      _
    $region21: #{tpu_custom_call.1} parent=1 // pred_fallthru
      _
    %v23 = vld [vmem:[%s0] sm:$0xff]
    %v24 = vld [vmem:[%s1] sm:$0xff]
    %v25 = vld [vmem:[%s1 + $0x8] sm:$0xff]
    %v26 = vld [vmem:[%s1 + $0x10] sm:$0xff]
    %v27 = vld [vmem:[%s1 + $0x18] sm:$0xff]
    %v28 = vld [vmem:[%s2] sm:$0x1]
    %v30 = vlaneseq
    %v31 = vshrl.u32 %v30, 7
    %v32 = vsub.s32 0, %v31
    %v33 = vrot.slane %v28, %v32
    %vm35 = vcmask 261120
    %v37 = vsel %vm35, %v23, 0
    %39 = vmatprep.subr.mxu0 0.0
    %40 = vmatpush1.msra.mxu0 0.0
    %41 = vmatprep.subr.mxu0 0.0
    %42 = vmatpush1.msra.mxu0 0.0
    %43 = vmatprep.subr.mxu0 0.0
    %44 = vmatpush1.msra.mxu0 0.0
    %45 = vmatprep.subr.mxu0 0.0
    %46 = vmatpush1.msra.mxu0 0.0
    %47 = vmatprep.subr.mxu0 0.0
    %48 = vmatpush1.msra.mxu0 0.0
    %49 = vmatprep.subr.mxu0 0.0
    %50 = vmatpush1.msra.mxu0 0.0
    %51 = vmatprep.subr.mxu0 0.0
    %52 = vmatpush1.msra.mxu0 0.0
    %53 = vmatprep.subr.mxu0 0.0
    %54 = vmatpush1.msra.mxu0 0.0
    %55 = vmatprep.subr.mxu0 0.0
    %56 = vmatpush1.msra.mxu0 0.0
    %57 = vmatprep.subr.mxu0 0.0
    %58 = vmatpush1.msra.mxu0 0.0
    %59 = vmatprep.subr.mxu0 0.0
    %60 = vmatpush1.msra.mxu0 0.0
    %61 = vmatprep.subr.mxu0 0.0
    %62 = vmatpush1.msra.mxu0 0.0
    %63 = vmatprep.subr.mxu0 0.0
    %64 = vmatpush1.msra.mxu0 %v27
    %65 = vmatprep.subr.mxu0 0.0
    %66 = vmatpush1.msra.mxu0 %v26
    %67 = vmatprep.subr.mxu0 0.0
    %68 = vmatpush1.msra.mxu0 %v25
    %69 = vmatprep.subr.mxu0 0.0
    %70 = vmatpush1.msra.mxu0 %v24
    %71 = vmatprep.subr.mxu0 0.0
    %72 = vmatpush2.msra.mxu0 0.0
    %73 = vmatprep.subr.mxu0 0.0
    %74 = vmatpush2.msra.mxu0 0.0
    %75 = vmatprep.subr.mxu0 0.0
    %76 = vmatpush2.msra.mxu0 0.0
    %77 = vmatprep.subr.mxu0 0.0
    %78 = vmatpush2.msra.mxu0 0.0
    %79 = vmatprep.subr.mxu0 0.0
    %80 = vmatpush2.msra.mxu0 0.0
    %81 = vmatprep.subr.mxu0 0.0
    %82 = vmatpush2.msra.mxu0 0.0
    %83 = vmatprep.subr.mxu0 0.0
    %84 = vmatpush2.msra.mxu0 0.0
    %85 = vmatprep.subr.mxu0 0.0
    %86 = vmatpush2.msra.mxu0 0.0
    %87 = vmatprep.subr.mxu0 0.0
    %88 = vmatpush2.msra.mxu0 0.0
    %89 = vmatprep.subr.mxu0 0.0
    %90 = vmatpush2.msra.mxu0 0.0
    %91 = vmatprep.subr.mxu0 0.0
    %92 = vmatpush2.msra.mxu0 0.0
    %93 = vmatprep.subr.mxu0 0.0
    %94 = vmatpush2.msra.mxu0 0.0
    %95 = vmatprep.subr.mxu0 0.0
    %96 = vmatpush2.msra.mxu0 0.0
    %97 = vmatprep.subr.mxu0 0.0
    %98 = vmatpush2.msra.mxu0 0.0
    %99 = vmatprep.subr.mxu0 0.0
    %100 = vmatpush2.msra.mxu0 0.0
    %101 = vmatprep.subr.mxu0 0.0
    %102 = vmatpush2.msra.mxu0 0.0
    %103 = vmatprep.mubr.f32.mxu0 0.0
    %104 = vmatmul.mubr.f32.gmra.mxu0 %v37
    %v105 = vpop.f32.mrf.mxu0
    %v106 = vadd.f32 %v33, %v105
    %v107 = vpop.f32.mrf.mxu0
    %108 = vdwg.mxu0
    %v109 = vld [vmem:[%s3] sm:$0xff]
    %v110 = vld [vmem:[%s4] sm:$0xff]
    %v111 = vcvt.f32.s32.to.zero.pseudo %v109
    %vm112 = vcmp.gt.s32.totalorder %v111, 0
    %v113 = vsel %vm112, %v111, 0
    %vm114 = vcmp.lt.s32.totalorder %v113, 7
    %v115 = vsel %vm114, %v113, 7
    %v116 = vlaneseq
    %v117 = vand.u32 %v116, 127
    %vm118 = vcmp.lt.s32.totalorder %v117, 8
    %119 = vset.pattern.permute.xlu0 0
    %120 = vperm.xlu0 %119, %v115
    %v121 = vpop.permute.xlu0 %120
    %vm122 = vcmp.eq.s32.totalorder %v117, %v121
    %v123 = vsel %vm122, 1, 0
    %v124 = vcvt.s32.f32 %v123
    %v125 = vadd.s32 %v115, 8
    %126 = vset.pattern.permute.xlu0 0
    %127 = vperm.xlu0 %126, %v125
    %v128 = vpop.permute.xlu0 %127
    %vm129 = vcmp.eq.s32.totalorder %v117, %v128
    %v130 = vsel %vm129, 1, 0
    %v131 = vcvt.s32.f32 %v130
    %v132 = vmul.f32 %v106, %v131
    %vm133 = vcmask 130048
    %v134 = vsel %vm133, %v132, 0.0
    %135 = vadd.xlane.f32.xlu0 %v134
    %v136 = vpop.xlane.xlu0 %135
    %vm137 = vcmask 7168
    %138 = vst.msk [vmem:[%s5] sm:$0xff] %vm137, %v136
    %v139 = vsel %vm118, %v106, -1e+30
    %v140 = vsel %vm133, %v139, -inf
    %141 = vmax.xlane.f32.xlu0 %v140
    %v142 = vpop.xlane.xlu0 %141
    %v143 = vsub.f32 %v106, %v142
    %v144 = vmul.f32 %v143, 1.442695
    %v145 = vpow.pop %v144
    %v146 = vsel %vm118, %v145, 0.0
    %v147 = vsel %vm133, %v146, 0.0
    %148 = vadd.xlane.f32.xlu0 %v147
    %v149 = vpop.xlane.xlu0 %148
    %v150 = vlog2.pop %v149
    %v151 = vmul.f32 %v150, 0.6931472
    %v152 = vsub.f32 %v143, %v151
    %v153 = vmul.f32 %v152, %v124
    %v154 = vsel %vm133, %v153, 0.0
    %155 = vadd.xlane.f32.xlu0 %v154
    %v156 = vpop.xlane.xlu0 %155
    %v157 = vsub.f32 0.0, %v156
    %v158 = vsel %vm137, %v157, 0.0
    %159 = vadd.xlane.f32.xlu0 %v158
    %v160 = vpop.xlane.xlu0 %159
    %v161 = vrot.slane %v160, 4
    %v162 = vadd.f32 %v160, %v161
    %v163 = vrot.slane %v162, 2
    %v164 = vadd.f32 %v162, %v163
    %v165 = vrot.slane %v164, 1
    %v166 = vadd.f32 %v164, %v165
    %s167 = vtos %v166
    %v168 = vrcp.pop 5.0
    %v169 = vmul.f32 %v109, %v168
    %v170 = vsub.f32 %v136, %v169
    %v171 = vmul.f32 %v170, %v170
    %v172 = vmul.f32 %v171, %v110
    %v173 = vsel %vm137, %v172, 0.0
    %174 = vadd.xlane.f32.xlu0 %v173
    %v175 = vpop.xlane.xlu0 %174
    %v176 = vrot.slane %v175, 4
    %v177 = vadd.f32 %v175, %v176
    %v178 = vrot.slane %v177, 2
    %v179 = vadd.f32 %v177, %v178
    %v180 = vrot.slane %v179, 1
    %v181 = vadd.f32 %v179, %v180
    %s182 = vtos %v181
    %vm183 = vcmp.eq.s32.totalorder %v117, 0
    %v184 = vstv %s167
    %v185 = vsel %vm183, %v184, 0.0
    %vm186 = vcmp.eq.s32.totalorder %v117, 1
    %v187 = vstv %s182
    %v188 = vsel %vm186, %v187, 0.0
    %v189 = vadd.f32 %v185, %v188
    %190 = vst [vmem:[#allocation2] sm:$0x1] %v189
    // Predicated region
    $region22: #{tpu_custom_call.1} parent=1 // pred_check
      _
    $region23: #{tpu_custom_call.1} parent=1 // pred_check_branch
      %192 = sbr.rel (0) target = $region25
    $region24: #{tpu_custom_call.1} parent=1 // pred_region
      _
    $region25: #{tpu_custom_call.1} parent=1 // pred_fallthru
      _
    // Predicated region
    $region26: #{tpu_custom_call.1} parent=1 // pred_check
      _
    $region27: #{tpu_custom_call.1} parent=1 // pred_check_branch
      %194 = sbr.rel (0) target = $region29
    $region28: #{tpu_custom_call.1} parent=1 // pred_region
      %s196 = ssub.s32 16, 16
      %197 = vsyncadd [#allocation3], %s196
      %s199 = sshll.u32 [#allocation2], 4
      %s200 = int_to_ptr.vmem [resolvable:$true] %s199
      %202 = dma.vmem_to_hbm [thread:$0]  %s200, 16, %s6, [#allocation3]
    $region29: #{tpu_custom_call.1} parent=1 // pred_fallthru
      _
    // Predicated region
    $region30: #{tpu_custom_call.1} parent=1 // pred_check
      _
    $region31: #{tpu_custom_call.1} parent=1 // pred_check_branch
      %204 = sbr.rel (0) target = $region33
    $region32: #{tpu_custom_call.1} parent=1 // pred_region
      _
    $region33: #{tpu_custom_call.1} parent=1 // pred_fallthru
      _
    // Predicated region
    $region34: #{tpu_custom_call.1} parent=1 // pred_check
      _
    $region35: #{tpu_custom_call.1} parent=1 // pred_check_branch
      %206 = sbr.rel (0) target = $region37
    $region36: #{tpu_custom_call.1} parent=1 // pred_region
      %207 = dma.done [#allocation3], 16
    $region37: #{tpu_custom_call.1} parent=1 // pred_fallthru
      _
    %208 = vsyncpa [#allocation3], 1

</llo_original>
